<compile_context>
chip_gen: v6e
topology: v6e:2x2x1
jax: 0.10.0
libtpu: 0.0.40
codegen_flags: <defaults>
</compile_context>

<pallas_src>
import jax
import jax.numpy as jnp
from jax.experimental import pallas as pl
from jax.experimental.pallas import tpu as pltpu


def _round_up(n: int, m: int) -> int:
    return ((n + m - 1) // m) * m


def nn_kernel(x_ref, w1_ref, b1_ref, w2_ref, b2_ref, out_ref):
    """relu(x @ w1 + b1) @ w2 + b2 for one batch tile.

    The weight dtype (f32 or bf16) drives the MXU operand dtype; accumulation,
    bias-add and ReLU stay in f32 (v5e VPU has no bf16 support).
    """
    w1 = w1_ref[...]                           # (D_in, H_pad)
    w2 = w2_ref[...]                           # (H_pad, C_pad)
    x = x_ref[...].astype(w1.dtype)            # no-op cast on the f32 path

    # fc1 + bias + ReLU (f32 accumulate, lane-dense H_pad).
    h = jnp.dot(x, w1, preferred_element_type=jnp.float32)
    h = jnp.maximum(h + b1_ref[...], 0.0)      # (TB, H_pad)

    # fc2 + bias.
    o = jnp.dot(h.astype(w2.dtype), w2, preferred_element_type=jnp.float32)
    out_ref[...] = (o + b2_ref[...]).astype(out_ref.dtype)   # (TB, C_pad)


def prepare_params(w1, b1, w2, b2, *, weights_bf16=False):
    """One-time parameter prep: zero-pad hidden/class dims to 128 lanes and
    optionally pre-cast weights to bf16 (biases stay f32 for the f32 epilogue).

    Padding is mathematically a no-op (zero columns/rows, zero bias)."""
    H = w1.shape[1]
    C = w2.shape[1]
    H_pad = _round_up(H, 128)
    C_pad = _round_up(C, 128)
    w1_p = jnp.pad(w1, ((0, 0), (0, H_pad - H)))
    b1_p = jnp.pad(b1, ((0, 0), (0, H_pad - H)))
    w2_p = jnp.pad(w2, ((0, H_pad - H), (0, C_pad - C)))
    b2_p = jnp.pad(b2, ((0, 0), (0, C_pad - C)))
    if weights_bf16:
        w1_p = w1_p.astype(jnp.bfloat16)
        w2_p = w2_p.astype(jnp.bfloat16)
    return w1_p, b1_p, w2_p, b2_p


def nn_forward(x, w1_p, b1_p, w2_p, b2_p, num_classes, *,
               tb=2048, out_dtype=jnp.float32):
    """x: (B, D_in) f32 (or bf16); params pre-padded via prepare_params."""
    B, D_in = x.shape
    H_pad = w1_p.shape[1]
    C_pad = w2_p.shape[1]

    bf16_involved = (w1_p.dtype == jnp.bfloat16) or (out_dtype == jnp.bfloat16)
    sub = 16 if bf16_involved else 8           # clean sublane packing

    # Tile-count selection: fat tiles (<= tb rows) to amortize per-step overhead,
    # minimal batch padding, and >= 2 steps once the batch is a few hundred rows
    # so the v7x dual-TC "parallel" split actually engages.
    n_tiles = max(1, pl.cdiv(B, tb))
    if n_tiles == 1 and B >= 256:
        n_tiles = 2
    TB = _round_up(pl.cdiv(B, n_tiles), sub)
    B_pad = TB * n_tiles
    x_p = jnp.pad(x, ((0, B_pad - B), (0, 0)))

    out_padded = pl.pallas_call(
        nn_kernel,
        out_shape=jax.ShapeDtypeStruct((B_pad, C_pad), out_dtype),
        grid_spec=pltpu.PrefetchScalarGridSpec(
            num_scalar_prefetch=0,
            grid=(n_tiles,),
            in_specs=[
                pl.BlockSpec((TB, D_in), lambda i: (i, 0)),        # x tile
                pl.BlockSpec((D_in, H_pad), lambda i: (0, 0)),     # w1 resident
                pl.BlockSpec((1, H_pad), lambda i: (0, 0)),        # b1 resident
                pl.BlockSpec((H_pad, C_pad), lambda i: (0, 0)),    # w2 resident
                pl.BlockSpec((1, C_pad), lambda i: (0, 0)),        # b2 resident
            ],
            out_specs=pl.BlockSpec((TB, C_pad), lambda i: (i, 0)),
        ),
        compiler_params=pltpu.CompilerParams(
            dimension_semantics=("parallel",),
        ),
    )(x_p, w1_p, b1_p, w2_p, b2_p)

    # Slice the real batch rows and output classes back out.
    return out_padded[:B, :num_classes]


if __name__ == "__main__":
    # Small shapes consistent with the module: batch=64 (per docstring),
    # input_size=32, hidden=50 (fixed by the module), num_classes=8.
    batch, input_size, hidden, num_classes = 64, 32, 50, 8

    key = jax.random.PRNGKey(0)
    kx, kw1, kb1, kw2, kb2, kxb = jax.random.split(key, 6)

    x = jax.random.normal(kx, (batch, input_size), dtype=jnp.float32)

    # Deterministic parameter init (PyTorch-style uniform bounds), stored as
    # (in, out) so the kernel computes x @ W + b directly.
    lim1 = 1.0 / jnp.sqrt(input_size)
    w1 = jax.random.uniform(kw1, (input_size, hidden), jnp.float32, -lim1, lim1)
    b1 = jax.random.uniform(kb1, (1, hidden), jnp.float32, -lim1, lim1)
    lim2 = 1.0 / jnp.sqrt(hidden)
    w2 = jax.random.uniform(kw2, (hidden, num_classes), jnp.float32, -lim2, lim2)
    b2 = jax.random.uniform(kb2, (1, num_classes), jnp.float32, -lim2, lim2)

    def ref_fn(xx):
        return jnp.maximum(xx @ w1 + b1, 0.0) @ w2 + b2

    # ---- f32 path (matches PyTorch f32 semantics tightly) ------------------
    params_f32 = prepare_params(w1, b1, w2, b2, weights_bf16=False)
    out_f32 = nn_forward(x, *params_f32, num_classes)
    jax.block_until_ready(out_f32)
    assert out_f32.shape == (batch, num_classes)
    assert jnp.allclose(out_f32, ref_fn(x), atol=1e-5, rtol=1e-5)

    # ---- f32 path, awkward batch (exercises minimal-pad, 2-tile grid) ------
    x_big = jax.random.normal(kxb, (300, input_size), dtype=jnp.float32)
    out_big = nn_forward(x_big, *params_f32, num_classes)
    jax.block_until_ready(out_big)
    assert out_big.shape == (300, num_classes)
    assert jnp.allclose(out_big, ref_fn(x_big), atol=1e-5, rtol=1e-5)

    # ---- bf16 MXU path (pre-cast weights, bf16 output writeback) -----------
    params_bf16 = prepare_params(w1, b1, w2, b2, weights_bf16=True)
    out_bf16 = nn_forward(x, *params_bf16, num_classes, out_dtype=jnp.bfloat16)
    jax.block_until_ready(out_bf16)
    assert out_bf16.shape == (batch, num_classes)
    assert jnp.allclose(out_bf16.astype(jnp.float32), ref_fn(x),
                        atol=5e-2, rtol=5e-2)

    print("KERNEL_OK")
</pallas_src>

<mosaic_0001>
module attributes {stable_mosaic.version = 11 : i64} {
  func.func @nn_kernel(%arg0: i32, %arg1: memref<64x32xf32, #tpu.memory_space<vmem>>, %arg2: memref<32x128xf32, #tpu.memory_space<vmem>>, %arg3: memref<1x128xf32, #tpu.memory_space<vmem>>, %arg4: memref<128x128xf32, #tpu.memory_space<vmem>>, %arg5: memref<1x128xf32, #tpu.memory_space<vmem>>, %arg6: memref<64x128xf32, #tpu.memory_space<vmem>>) attributes {dimension_semantics = [#tpu.dimension_semantics<parallel>], iteration_bounds = array<i64: 1>, scalar_prefetch = 0 : i64, scratch_operands = 0 : i64, tpu.core_type = #tpu.core_type<tc>, window_params = [{transform_indices = @transform_0, window_bounds = array<i64: 64, 32>}, {pipeline_mode = #tpu.pipeline_mode<synchronous>, transform_indices = @transform_1, window_bounds = array<i64: 32, 128>}, {pipeline_mode = #tpu.pipeline_mode<synchronous>, transform_indices = @transform_2, window_bounds = array<i64: 1, 128>}, {pipeline_mode = #tpu.pipeline_mode<synchronous>, transform_indices = @transform_3, window_bounds = array<i64: 128, 128>}, {pipeline_mode = #tpu.pipeline_mode<synchronous>, transform_indices = @transform_4, window_bounds = array<i64: 1, 128>}, {transform_indices = @transform_5, window_bounds = array<i64: 64, 128>}]} {
    %c0 = arith.constant 0 : index
    %c0_0 = arith.constant 0 : index
    %0 = vector.load %arg2[%c0, %c0_0] : memref<32x128xf32, #tpu.memory_space<vmem>>, vector<32x128xf32>
    %c0_1 = arith.constant 0 : index
    %c0_2 = arith.constant 0 : index
    %1 = vector.load %arg4[%c0_1, %c0_2] : memref<128x128xf32, #tpu.memory_space<vmem>>, vector<128x128xf32>
    %c0_3 = arith.constant 0 : index
    %c0_4 = arith.constant 0 : index
    %2 = vector.load %arg1[%c0_3, %c0_4] : memref<64x32xf32, #tpu.memory_space<vmem>>, vector<64x32xf32>
    %cst = arith.constant dense<0.000000e+00> : vector<64x128xf32>
    %3 = tpu.matmul %2, %0, %cst {dimension_numbers = #tpu.dot_dimension_numbers<[1], [0], [0], [1], [0, 0, 1, 1], [], []>} : vector<64x32xf32>, vector<32x128xf32>, vector<64x128xf32> -> vector<64x128xf32>
    %c0_5 = arith.constant 0 : index
    %c0_6 = arith.constant 0 : index
    %4 = vector.load %arg3[%c0_5, %c0_6] : memref<1x128xf32, #tpu.memory_space<vmem>>, vector<1x128xf32>
    %5 = vector.broadcast %4 : vector<1x128xf32> to vector<64x128xf32>
    %6 = arith.addf %3, %5 : vector<64x128xf32>
    %cst_7 = arith.constant 0.000000e+00 : f32
    %7 = vector.broadcast %cst_7 : f32 to vector<64x128xf32>
    %8 = arith.maximumf %6, %7 : vector<64x128xf32>
    %cst_8 = arith.constant dense<0.000000e+00> : vector<64x128xf32>
    %9 = tpu.matmul %8, %1, %cst_8 {dimension_numbers = #tpu.dot_dimension_numbers<[1], [0], [0], [1], [0, 0, 1, 1], [], []>} : vector<64x128xf32>, vector<128x128xf32>, vector<64x128xf32> -> vector<64x128xf32>
    %c0_9 = arith.constant 0 : index
    %c0_10 = arith.constant 0 : index
    %10 = vector.load %arg5[%c0_9, %c0_10] : memref<1x128xf32, #tpu.memory_space<vmem>>, vector<1x128xf32>
    %11 = vector.broadcast %10 : vector<1x128xf32> to vector<64x128xf32>
    %12 = arith.addf %9, %11 : vector<64x128xf32>
    %c0_11 = arith.constant 0 : index
    %c0_12 = arith.constant 0 : index
    %13 = vector.load %arg6[%c0_11, %c0_12] : memref<64x128xf32, #tpu.memory_space<vmem>>, vector<64x128xf32>
    tpu.vector_store %arg6[%c0_11, %c0_12], %12 {strides = array<i32>} : memref<64x128xf32, #tpu.memory_space<vmem>>, vector<64x128xf32>,
    return
  }
  func.func @transform_0(%arg0: i32) -> (i32, i32) {
    %c0_i32 = arith.constant 0 : i32
    %c0_i32_0 = arith.constant 0 : i32
    return %arg0, %c0_i32 : i32, i32
  }
  func.func @transform_1(%arg0: i32) -> (i32, i32) {
    %c0_i32 = arith.constant 0 : i32
    %c0_i32_0 = arith.constant 0 : i32
    %c0_i32_1 = arith.constant 0 : i32
    return %c0_i32, %c0_i32_0 : i32, i32
  }
  func.func @transform_2(%arg0: i32) -> (i32, i32) {
    %c0_i32 = arith.constant 0 : i32
    %c0_i32_0 = arith.constant 0 : i32
    %c0_i32_1 = arith.constant 0 : i32
    return %c0_i32, %c0_i32_0 : i32, i32
  }
  func.func @transform_3(%arg0: i32) -> (i32, i32) {
    %c0_i32 = arith.constant 0 : i32
    %c0_i32_0 = arith.constant 0 : i32
    %c0_i32_1 = arith.constant 0 : i32
    return %c0_i32, %c0_i32_0 : i32, i32
  }
  func.func @transform_4(%arg0: i32) -> (i32, i32) {
    %c0_i32 = arith.constant 0 : i32
    %c0_i32_0 = arith.constant 0 : i32
    %c0_i32_1 = arith.constant 0 : i32
    return %c0_i32, %c0_i32_0 : i32, i32
  }
  func.func @transform_5(%arg0: i32) -> (i32, i32) {
    %c0_i32 = arith.constant 0 : i32
    %c0_i32_0 = arith.constant 0 : i32
    return %arg0, %c0_i32 : i32, i32
  }
}

</mosaic_0001>

<llo_original>
// kernel: tpu_custom_call.1
$region0: #{tpu_custom_call.1}
  #allocation0 [shape = 'u32[]', space=smem, size = 0x4, offset = 0x4, fixed_abs, tag = 'smem constant byte address 0x4 - core index']
  #allocation1 [shape = 'u32[144,128]{1,0:T(1,128)}', space=vmem, size = 0x12000, scoped, tag = 'internal scratch']
  %s0 = inlined_call_operand.vmem [shape: f32[64,32], index: 0, kind: input, shape index: {}]
  %s1 = inlined_call_operand.vmem [shape: f32[32,128], index: 1, kind: input, shape index: {}]
  %s2 = inlined_call_operand.vmem [shape: f32[1,128], index: 2, kind: input, shape index: {}]
  %s3 = inlined_call_operand.hbm [shape: f32[128,128], index: 3, kind: input, shape index: {}]
  %s4 = inlined_call_operand.vmem [shape: f32[1,128], index: 4, kind: input, shape index: {}]
  %s5 = inlined_call_operand.hbm [shape: f32[64,128], index: 5, kind: output, shape index: {}]
  %s6 = sld [smem:[#allocation0]]
  $region34: #{tpu_custom_call.1} parent=0
    _
  %s8 = ssub.s32 1, %s6
  %s9 = scalar_select 0, %s8, %s6
  $region1: #{tpu_custom_call.1} parent=0
    #allocation2 [shape = 'u8[65536]{0}', space=vmem, size = 0x10000, scoped, tag = 'input window, operand 3, single buffered']
    #allocation3 [shape = 's32[1]{0}', space=sflag, size = 0x4, scoped, tag = 'scoped memory for tpu_custom_call.1']
    #allocation4 [shape = 's32[1]{0}', space=sflag, size = 0x4, scoped, tag = 'scoped memory for tpu_custom_call.1']
    #allocation5 [shape = 'u8[32768]{0}', space=vmem, size = 0x8000, scoped, tag = 'output window, operand 0, single buffered']
    %10 = vsyncpa [#allocation3], 0
    %11 = vsyncpa [#allocation4], 0
    // Predicated region
    $region2: #{tpu_custom_call.1} parent=1 // pred_check
      _
    $region3: #{tpu_custom_call.1} parent=1 // pred_check_branch
      %13 = sbr.rel (0) target = $region5
    $region4: #{tpu_custom_call.1} parent=1 // pred_region
      _
    $region5: #{tpu_custom_call.1} parent=1 // pred_fallthru
      _
    // Predicated region
    $region6: #{tpu_custom_call.1} parent=1 // pred_check
      _
    $region7: #{tpu_custom_call.1} parent=1 // pred_check_branch
      %15 = sbr.rel (0) target = $region9
    $region8: #{tpu_custom_call.1} parent=1 // pred_region
      _
    $region9: #{tpu_custom_call.1} parent=1 // pred_fallthru
      _
    // Predicated region
    $region10: #{tpu_custom_call.1} parent=1 // pred_check
      _
    $region11: #{tpu_custom_call.1} parent=1 // pred_check_branch
      %17 = sbr.rel (0) target = $region13
    $region12: #{tpu_custom_call.1} parent=1 // pred_region
      _
    $region13: #{tpu_custom_call.1} parent=1 // pred_fallthru
      _
    // Predicated region
    $region14: #{tpu_custom_call.1} parent=1 // pred_check
      _
    $region15: #{tpu_custom_call.1} parent=1 // pred_check_branch
      %19 = sbr.rel (0) target = $region17
    $region16: #{tpu_custom_call.1} parent=1 // pred_region
      %s21 = ssub.s32 2048, 2048
      %22 = vsyncadd [#allocation3], %s21
      %s23 = sshll.u32 [#allocation2], 4
      %s24 = int_to_ptr.vmem [resolvable:$true] %s23
      %29 = dma.hbm_to_vmem [thread:$0]  %s3, 2048, %s24, [#allocation3], 128, 128, 8
    $region17: #{tpu_custom_call.1} parent=1 // pred_fallthru
      _
    // Predicated region
    $region18: #{tpu_custom_call.1} parent=1 // pred_check
      _
    $region19: #{tpu_custom_call.1} parent=1 // pred_check_branch
      %31 = sbr.rel (0) target = $region21
    $region20: #{tpu_custom_call.1} parent=1 // pred_region
      _
    $region21: #{tpu_custom_call.1} parent=1 // pred_fallthru
      _
    // Predicated region
    $region22: #{tpu_custom_call.1} parent=1 // pred_check
      _
    $region23: #{tpu_custom_call.1} parent=1 // pred_check_branch
      %33 = sbr.rel (0) target = $region25
    $region24: #{tpu_custom_call.1} parent=1 // pred_region
      %34 = dma.done [#allocation3], 2048
    $region25: #{tpu_custom_call.1} parent=1 // pred_fallthru
      _
    %v35 = vld [vmem:[%s1] sm:$0xff]
    %v36 = vld [vmem:[%s1 + $0x8] sm:$0xff]
    %v37 = vld [vmem:[%s1 + $0x10] sm:$0xff]
    %v38 = vld [vmem:[%s1 + $0x18] sm:$0xff]
    %v39 = vld [vmem:[#allocation2] sm:$0xff]
    %v40 = vld [vmem:[#allocation2 + $0x8] sm:$0xff]
    %v41 = vld [vmem:[#allocation2 + $0x10] sm:$0xff]
    %v42 = vld [vmem:[#allocation2 + $0x18] sm:$0xff]
    %v43 = vld [vmem:[#allocation2 + $0x20] sm:$0xff]
    %v44 = vld [vmem:[#allocation2 + $0x28] sm:$0xff]
    %v45 = vld [vmem:[#allocation2 + $0x30] sm:$0xff]
    %v46 = vld [vmem:[#allocation2 + $0x38] sm:$0xff]
    %v47 = vld [vmem:[#allocation2 + $0x40] sm:$0xff]
    %v48 = vld [vmem:[#allocation2 + $0x48] sm:$0xff]
    %v49 = vld [vmem:[#allocation2 + $0x50] sm:$0xff]
    %v50 = vld [vmem:[#allocation2 + $0x58] sm:$0xff]
    %v51 = vld [vmem:[#allocation2 + $0x60] sm:$0xff]
    %v52 = vld [vmem:[#allocation2 + $0x68] sm:$0xff]
    %v53 = vld [vmem:[#allocation2 + $0x70] sm:$0xff]
    %v54 = vld [vmem:[#allocation2 + $0x78] sm:$0xff]
    %v55 = vld [vmem:[%s0] sm:$0xff]
    %v56 = vld [vmem:[%s0 + $0x8] sm:$0xff]
    %v57 = vld [vmem:[%s0 + $0x10] sm:$0xff]
    %v58 = vld [vmem:[%s0 + $0x18] sm:$0xff]
    %v59 = vld [vmem:[%s0 + $0x20] sm:$0xff]
    %v60 = vld [vmem:[%s0 + $0x28] sm:$0xff]
    %v61 = vld [vmem:[%s0 + $0x30] sm:$0xff]
    %v62 = vld [vmem:[%s0 + $0x38] sm:$0xff]
    %v63 = vld [vmem:[%s2] sm:$0x1]
    %v65 = vlaneseq
    %v66 = vshrl.u32 %v65, 7
    %v67 = vsub.s32 0, %v66
    %v68 = vrot.slane %v63, %v67
    %vm70 = vcmask 261120
    %v72 = vsel %vm70, %v55, 0
    %v75 = vsel %vm70, %v56, 0
    %v78 = vsel %vm70, %v57, 0
    %v81 = vsel %vm70, %v58, 0
    %v84 = vsel %vm70, %v59, 0
    %v87 = vsel %vm70, %v60, 0
    %v90 = vsel %vm70, %v61, 0
    %v93 = vsel %vm70, %v62, 0
    %95 = vmatprep.subr.mxu0 0.0
    %96 = vmatpush1.msra.mxu0 0.0
    %97 = vmatprep.subr.mxu0 0.0
    %98 = vmatpush1.msra.mxu0 0.0
    %99 = vmatprep.subr.mxu0 0.0
    %100 = vmatpush1.msra.mxu0 0.0
    %101 = vmatprep.subr.mxu0 0.0
    %102 = vmatpush1.msra.mxu0 0.0
    %103 = vmatprep.subr.mxu0 0.0
    %104 = vmatpush1.msra.mxu0 0.0
    %105 = vmatprep.subr.mxu0 0.0
    %106 = vmatpush1.msra.mxu0 0.0
    %107 = vmatprep.subr.mxu0 0.0
    %108 = vmatpush1.msra.mxu0 0.0
    %109 = vmatprep.subr.mxu0 0.0
    %110 = vmatpush1.msra.mxu0 0.0
    %111 = vmatprep.subr.mxu0 0.0
    %112 = vmatpush1.msra.mxu0 0.0
    %113 = vmatprep.subr.mxu0 0.0
    %114 = vmatpush1.msra.mxu0 0.0
    %115 = vmatprep.subr.mxu0 0.0
    %116 = vmatpush1.msra.mxu0 0.0
    %117 = vmatprep.subr.mxu0 0.0
    %118 = vmatpush1.msra.mxu0 0.0
    %119 = vmatprep.subr.mxu0 0.0
    %120 = vmatpush1.msra.mxu0 %v38
    %121 = vmatprep.subr.mxu0 0.0
    %122 = vmatpush1.msra.mxu0 %v37
    %123 = vmatprep.subr.mxu0 0.0
    %124 = vmatpush1.msra.mxu0 %v36
    %125 = vmatprep.subr.mxu0 0.0
    %126 = vmatpush1.msra.mxu0 %v35
    %127 = vmatprep.subr.mxu0 0.0
    %128 = vmatpush2.msra.mxu0 0.0
    %129 = vmatprep.subr.mxu0 0.0
    %130 = vmatpush2.msra.mxu0 0.0
    %131 = vmatprep.subr.mxu0 0.0
    %132 = vmatpush2.msra.mxu0 0.0
    %133 = vmatprep.subr.mxu0 0.0
    %134 = vmatpush2.msra.mxu0 0.0
    %135 = vmatprep.subr.mxu0 0.0
    %136 = vmatpush2.msra.mxu0 0.0
    %137 = vmatprep.subr.mxu0 0.0
    %138 = vmatpush2.msra.mxu0 0.0
    %139 = vmatprep.subr.mxu0 0.0
    %140 = vmatpush2.msra.mxu0 0.0
    %141 = vmatprep.subr.mxu0 0.0
    %142 = vmatpush2.msra.mxu0 0.0
    %143 = vmatprep.subr.mxu0 0.0
    %144 = vmatpush2.msra.mxu0 0.0
    %145 = vmatprep.subr.mxu0 0.0
    %146 = vmatpush2.msra.mxu0 0.0
    %147 = vmatprep.subr.mxu0 0.0
    %148 = vmatpush2.msra.mxu0 0.0
    %149 = vmatprep.subr.mxu0 0.0
    %150 = vmatpush2.msra.mxu0 0.0
    %151 = vmatprep.subr.mxu0 0.0
    %152 = vmatpush2.msra.mxu0 0.0
    %153 = vmatprep.subr.mxu0 0.0
    %154 = vmatpush2.msra.mxu0 0.0
    %155 = vmatprep.subr.mxu0 0.0
    %156 = vmatpush2.msra.mxu0 0.0
    %157 = vmatprep.subr.mxu0 0.0
    %158 = vmatpush2.msra.mxu0 0.0
    %159 = vmatprep.mubr.f32.mxu0 0.0
    %160 = vmatmul.mubr.f32.gmra.mxu0 %v72
    %v161 = vpop.f32.mrf.mxu0
    %v162 = vadd.f32 %v68, %v161
    %v163 = vpop.f32.mrf.mxu0
    %164 = vmatprep.mubr.f32.mxu0 0.0
    %165 = vmatmul.mubr.f32.gmra.mxu0 %v75
    %v166 = vpop.f32.mrf.mxu0
    %v167 = vadd.f32 %v68, %v166
    %v168 = vpop.f32.mrf.mxu0
    %169 = vmatprep.mubr.f32.mxu0 0.0
    %170 = vmatmul.mubr.f32.gmra.mxu0 %v78
    %v171 = vpop.f32.mrf.mxu0
    %v172 = vadd.f32 %v68, %v171
    %v173 = vpop.f32.mrf.mxu0
    %174 = vmatprep.mubr.f32.mxu0 0.0
    %175 = vmatmul.mubr.f32.gmra.mxu0 %v81
    %v176 = vpop.f32.mrf.mxu0
    %v177 = vadd.f32 %v68, %v176
    %v178 = vpop.f32.mrf.mxu0
    %179 = vmatprep.mubr.f32.mxu0 0.0
    %180 = vmatmul.mubr.f32.gmra.mxu0 %v84
    %v181 = vpop.f32.mrf.mxu0
    %v182 = vadd.f32 %v68, %v181
    %v183 = vpop.f32.mrf.mxu0
    %184 = vmatprep.mubr.f32.mxu0 0.0
    %185 = vmatmul.mubr.f32.gmra.mxu0 %v87
    %v186 = vpop.f32.mrf.mxu0
    %v187 = vadd.f32 %v68, %v186
    %v188 = vpop.f32.mrf.mxu0
    %189 = vmatprep.mubr.f32.mxu0 0.0
    %190 = vmatmul.mubr.f32.gmra.mxu0 %v90
    %v191 = vpop.f32.mrf.mxu0
    %v192 = vadd.f32 %v68, %v191
    %v193 = vpop.f32.mrf.mxu0
    %194 = vmatprep.mubr.f32.mxu0 0.0
    %195 = vmatmul.mubr.f32.gmra.mxu0 %v93
    %v196 = vpop.f32.mrf.mxu0
    %v197 = vadd.f32 %v68, %v196
    %v198 = vpop.f32.mrf.mxu0
    %199 = vdwg.mxu0
    %v200 = vmax.f32 %v162, 0.0
    %v201 = vmax.f32 %v167, 0.0
    %v202 = vmax.f32 %v172, 0.0
    %v203 = vmax.f32 %v177, 0.0
    %v204 = vmax.f32 %v182, 0.0
    %v205 = vmax.f32 %v187, 0.0
    %v206 = vmax.f32 %v192, 0.0
    %v207 = vmax.f32 %v197, 0.0
    %v208 = vld [vmem:[%s4] sm:$0x1]
    %v210 = vlaneseq
    %v211 = vshrl.u32 %v210, 7
    %v212 = vsub.s32 0, %v211
    %v213 = vrot.slane %v208, %v212
    %215 = vmatprep.subr.mxu0 0.0
    %216 = vmatpush1.msra.mxu0 %v54
    %217 = vmatprep.subr.mxu0 0.0
    %218 = vmatpush1.msra.mxu0 %v53
    %219 = vmatprep.subr.mxu0 0.0
    %220 = vmatpush1.msra.mxu0 %v52
    %221 = vmatprep.subr.mxu0 0.0
    %222 = vmatpush1.msra.mxu0 %v51
    %223 = vmatprep.subr.mxu0 0.0
    %224 = vmatpush1.msra.mxu0 %v50
    %225 = vmatprep.subr.mxu0 0.0
    %226 = vmatpush1.msra.mxu0 %v49
    %227 = vmatprep.subr.mxu0 0.0
    %228 = vmatpush1.msra.mxu0 %v48
    %229 = vmatprep.subr.mxu0 0.0
    %230 = vmatpush1.msra.mxu0 %v47
    %231 = vmatprep.subr.mxu0 0.0
    %232 = vmatpush1.msra.mxu0 %v46
    %233 = vmatprep.subr.mxu0 0.0
    %234 = vmatpush1.msra.mxu0 %v45
    %235 = vmatprep.subr.mxu0 0.0
    %236 = vmatpush1.msra.mxu0 %v44
    %237 = vmatprep.subr.mxu0 0.0
    %238 = vmatpush1.msra.mxu0 %v43
    %239 = vmatprep.subr.mxu0 0.0
    %240 = vmatpush1.msra.mxu0 %v42
    %241 = vmatprep.subr.mxu0 0.0
    %242 = vmatpush1.msra.mxu0 %v41
    %243 = vmatprep.subr.mxu0 0.0
    %244 = vmatpush1.msra.mxu0 %v40
    %245 = vmatprep.subr.mxu0 0.0
    %246 = vmatpush1.msra.mxu0 %v39
    %247 = vmatprep.subr.mxu0 0.0
    %248 = vmatpush2.msra.mxu0 0.0
    %249 = vmatprep.subr.mxu0 0.0
    %250 = vmatpush2.msra.mxu0 0.0
    %251 = vmatprep.subr.mxu0 0.0
    %252 = vmatpush2.msra.mxu0 0.0
    %253 = vmatprep.subr.mxu0 0.0
    %254 = vmatpush2.msra.mxu0 0.0
    %255 = vmatprep.subr.mxu0 0.0
    %256 = vmatpush2.msra.mxu0 0.0
    %257 = vmatprep.subr.mxu0 0.0
    %258 = vmatpush2.msra.mxu0 0.0
    %259 = vmatprep.subr.mxu0 0.0
    %260 = vmatpush2.msra.mxu0 0.0
    %261 = vmatprep.subr.mxu0 0.0
    %262 = vmatpush2.msra.mxu0 0.0
    %263 = vmatprep.subr.mxu0 0.0
    %264 = vmatpush2.msra.mxu0 0.0
    %265 = vmatprep.subr.mxu0 0.0
    %266 = vmatpush2.msra.mxu0 0.0
    %267 = vmatprep.subr.mxu0 0.0
    %268 = vmatpush2.msra.mxu0 0.0
    %269 = vmatprep.subr.mxu0 0.0
    %270 = vmatpush2.msra.mxu0 0.0
    %271 = vmatprep.subr.mxu0 0.0
    %272 = vmatpush2.msra.mxu0 0.0
    %273 = vmatprep.subr.mxu0 0.0
    %274 = vmatpush2.msra.mxu0 0.0
    %275 = vmatprep.subr.mxu0 0.0
    %276 = vmatpush2.msra.mxu0 0.0
    %277 = vmatprep.subr.mxu0 0.0
    %278 = vmatpush2.msra.mxu0 0.0
    %279 = vmatprep.mubr.f32.mxu0 0.0
    %280 = vmatmul.mubr.f32.gmra.mxu0 %v200
    %v281 = vpop.f32.mrf.mxu0
    %v282 = vadd.f32 %v213, %v281
    %v283 = vpop.f32.mrf.mxu0
    %284 = vmatprep.mubr.f32.mxu0 0.0
    %285 = vmatmul.mubr.f32.gmra.mxu0 %v201
    %v286 = vpop.f32.mrf.mxu0
    %v287 = vadd.f32 %v213, %v286
    %v288 = vpop.f32.mrf.mxu0
    %289 = vmatprep.mubr.f32.mxu0 0.0
    %290 = vmatmul.mubr.f32.gmra.mxu0 %v202
    %v291 = vpop.f32.mrf.mxu0
    %v292 = vadd.f32 %v213, %v291
    %v293 = vpop.f32.mrf.mxu0
    %294 = vmatprep.mubr.f32.mxu0 0.0
    %295 = vmatmul.mubr.f32.gmra.mxu0 %v203
    %v296 = vpop.f32.mrf.mxu0
    %v297 = vadd.f32 %v213, %v296
    %v298 = vpop.f32.mrf.mxu0
    %299 = vmatprep.mubr.f32.mxu0 0.0
    %300 = vmatmul.mubr.f32.gmra.mxu0 %v204
    %v301 = vpop.f32.mrf.mxu0
    %v302 = vadd.f32 %v213, %v301
    %v303 = vpop.f32.mrf.mxu0
    %304 = vmatprep.mubr.f32.mxu0 0.0
    %305 = vmatmul.mubr.f32.gmra.mxu0 %v205
    %v306 = vpop.f32.mrf.mxu0
    %v307 = vadd.f32 %v213, %v306
    %v308 = vpop.f32.mrf.mxu0
    %309 = vmatprep.mubr.f32.mxu0 0.0
    %310 = vmatmul.mubr.f32.gmra.mxu0 %v206
    %v311 = vpop.f32.mrf.mxu0
    %v312 = vadd.f32 %v213, %v311
    %v313 = vpop.f32.mrf.mxu0
    %314 = vmatprep.mubr.f32.mxu0 0.0
    %315 = vmatmul.mubr.f32.gmra.mxu0 %v207
    %v316 = vpop.f32.mrf.mxu0
    %v317 = vadd.f32 %v213, %v316
    %v318 = vpop.f32.mrf.mxu0
    %319 = vdwg.mxu0
    %320 = vst [vmem:[#allocation5] sm:$0xff] %v282
    %321 = vst [vmem:[#allocation5 + $0x8] sm:$0xff] %v287
    %322 = vst [vmem:[#allocation5 + $0x10] sm:$0xff] %v292
    %323 = vst [vmem:[#allocation5 + $0x18] sm:$0xff] %v297
    %324 = vst [vmem:[#allocation5 + $0x20] sm:$0xff] %v302
    %325 = vst [vmem:[#allocation5 + $0x28] sm:$0xff] %v307
    %326 = vst [vmem:[#allocation5 + $0x30] sm:$0xff] %v312
    %327 = vst [vmem:[#allocation5 + $0x38] sm:$0xff] %v317
    // Predicated region
    $region26: #{tpu_custom_call.1} parent=1 // pred_check
      _
    $region27: #{tpu_custom_call.1} parent=1 // pred_check_branch
      %329 = sbr.rel (0) target = $region29
    $region28: #{tpu_custom_call.1} parent=1 // pred_region
      %s331 = ssub.s32 1024, 1024
      %332 = vsyncadd [#allocation4], %s331
      %s333 = sshll.u32 [#allocation5], 4
      %s334 = int_to_ptr.vmem [resolvable:$true] %s333
      %339 = dma.vmem_to_hbm [thread:$0]  %s334, 1024, %s5, [#allocation4], 128, 128, 8
    $region29: #{tpu_custom_call.1} parent=1 // pred_fallthru
      _
    // Predicated region
    $region30: #{tpu_custom_call.1} parent=1 // pred_check
      _
    $region31: #{tpu_custom_call.1} parent=1 // pred_check_branch
      %341 = sbr.rel (0) target = $region33
    $region32: #{tpu_custom_call.1} parent=1 // pred_region
      %342 = dma.done [#allocation4], 1024
    $region33: #{tpu_custom_call.1} parent=1 // pred_fallthru
      _
    %343 = vsyncpa [#allocation3], 1
    %344 = vsyncpa [#allocation4], 1

</llo_original>
